<compile_context>
chip_gen: v7x
topology: tpu7x:2x2x1
jax: 0.10.0
libtpu: 0.0.40
codegen_flags: <defaults>
</compile_context>

<pallas_src>
import jax
import jax.numpy as jnp
import numpy as np
from jax.experimental import pallas as pl
from jax.experimental.pallas import tpu as pltpu


def _cos_rows_kernel(yt_ref, yp_ref, cos_ref):
    """One grid step: full cosine similarity for a (tb, D) slab of rows."""
    yt = yt_ref[...].astype(jnp.float32)
    yp = yp_ref[...].astype(jnp.float32)

    dot = jnp.sum(yp * yt, axis=1, keepdims=True)   # (tb, 1)
    t2 = jnp.sum(yt * yt, axis=1, keepdims=True)    # (tb, 1)
    p2 = jnp.sum(yp * yp, axis=1, keepdims=True)    # (tb, 1)

    eps = jnp.float32(1e-8)
    denom = jnp.maximum(jnp.sqrt(t2) * jnp.sqrt(p2), eps)
    cos_ref[...] = dot / denom                      # per-row cosine


def _choose_tb(B, D, bytes_per_row_both_inputs):
    """Pick a batch tile: ~16 MiB of input per grid step, VMEM-budget capped."""
    vmem_budget = 40 * 1024 * 1024   # for 2 inputs x 2 pipeline buffers
    target_step = 16 * 1024 * 1024   # input bytes moved per grid step
    tb = min(vmem_budget // (2 * bytes_per_row_both_inputs),
             max(1, target_step // bytes_per_row_both_inputs))
    tb = max(8, (tb // 8) * 8)                       # sublane multiple
    b_pad8 = ((B + 7) // 8) * 8
    return min(tb, b_pad8)
    # TODO(synk): for extreme D where even tb=8 overflows VMEM, fall back to a
    # feature-tiled (D-split) variant with lane-dense accumulators.


def cosine_similarity_loss(y_true, y_pred):
    assert y_true.shape == y_pred.shape and y_true.ndim == 2
    B, D = y_true.shape

    row_bytes = D * (np.dtype(y_true.dtype).itemsize
                     + np.dtype(y_pred.dtype).itemsize)
    tb = _choose_tb(B, D, row_bytes)

    # Pad the batch up to a multiple of tb with zero rows (they contribute
    # cos == 0 and are sliced away before the mean).
    b_pad = pl.cdiv(B, tb) * tb
    if b_pad != B:
        pad = ((0, b_pad - B), (0, 0))
        y_true = jnp.pad(y_true, pad)
        y_pred = jnp.pad(y_pred, pad)

    cos_rows = pl.pallas_call(
        _cos_rows_kernel,
        out_shape=jax.ShapeDtypeStruct((b_pad, 1), jnp.float32),
        grid_spec=pltpu.PrefetchScalarGridSpec(
            num_scalar_prefetch=0,
            grid=(b_pad // tb,),
            in_specs=[
                pl.BlockSpec((tb, D), lambda b: (b, 0)),
                pl.BlockSpec((tb, D), lambda b: (b, 0)),
            ],
            out_specs=pl.BlockSpec((tb, 1), lambda b: (b, 0)),
        ),
        compiler_params=pltpu.CompilerParams(
            dimension_semantics=("parallel",),
            vmem_limit_bytes=48 * 1024 * 1024,
        ),
    )(y_true, y_pred)

    # Tiny final reduction in plain JAX (keeps the grid axis race-free /
    # megacore-friendly).
    return jnp.sum(cos_rows[:B, 0]) / jnp.float32(B)


if __name__ == "__main__":
    key = jax.random.PRNGKey(0)
    k1, k2 = jax.random.split(key)
    # Small shapes; B=6 exercises the batch-padding path (padded to 8).
    B, D = 6, 256
    y_true = jax.random.normal(k1, (B, D), dtype=jnp.float32)
    y_pred = jax.random.normal(k2, (B, D), dtype=jnp.float32)

    loss = jax.block_until_ready(cosine_similarity_loss(y_true, y_pred))

    # Pure-JAX reference (same formula as torch.nn.CosineSimilarity, eps=1e-8).
    dot = jnp.sum(y_true * y_pred, axis=1)
    denom = jnp.maximum(
        jnp.linalg.norm(y_true, axis=1) * jnp.linalg.norm(y_pred, axis=1), 1e-8
    )
    ref = jnp.mean(dot / denom)

    assert jnp.allclose(loss, ref, atol=1e-5, rtol=1e-5), (loss, ref)
    print("KERNEL_OK")
</pallas_src>

<mosaic_0001>
module attributes {stable_mosaic.version = 11 : i64} {
  func.func @_cos_rows_kernel(%arg0: i32, %arg1: memref<8x256xf32, #tpu.memory_space<vmem>>, %arg2: memref<8x256xf32, #tpu.memory_space<vmem>>, %arg3: memref<8x1xf32, #tpu.memory_space<vmem>>) attributes {dimension_semantics = [#tpu.dimension_semantics<parallel>], iteration_bounds = array<i64: 1>, scalar_prefetch = 0 : i64, scratch_operands = 0 : i64, tpu.core_type = #tpu.core_type<tc>, window_params = [{transform_indices = @transform_0, window_bounds = array<i64: 8, 256>}, {transform_indices = @transform_1, window_bounds = array<i64: 8, 256>}, {transform_indices = @transform_2, window_bounds = array<i64: 8, 1>}]} {
    %c0 = arith.constant 0 : index
    %c0_0 = arith.constant 0 : index
    %0 = vector.load %arg1[%c0, %c0_0] : memref<8x256xf32, #tpu.memory_space<vmem>>, vector<8x256xf32>
    %c0_1 = arith.constant 0 : index
    %c0_2 = arith.constant 0 : index
    %1 = vector.load %arg2[%c0_1, %c0_2] : memref<8x256xf32, #tpu.memory_space<vmem>>, vector<8x256xf32>
    %2 = arith.mulf %1, %0 : vector<8x256xf32>
    %cst = arith.constant dense<0.000000e+00> : vector<8xf32>
    %3 = vector.multi_reduction <add>, %2, %cst [1] : vector<8x256xf32> to vector<8xf32>
    %4 = vector.shape_cast %3 : vector<8xf32> to vector<8x1xf32>
    %5 = arith.mulf %0, %0 : vector<8x256xf32>
    %cst_3 = arith.constant dense<0.000000e+00> : vector<8xf32>
    %6 = vector.multi_reduction <add>, %5, %cst_3 [1] : vector<8x256xf32> to vector<8xf32>
    %7 = vector.shape_cast %6 : vector<8xf32> to vector<8x1xf32>
    %8 = arith.mulf %1, %1 : vector<8x256xf32>
    %cst_4 = arith.constant dense<0.000000e+00> : vector<8xf32>
    %9 = vector.multi_reduction <add>, %8, %cst_4 [1] : vector<8x256xf32> to vector<8xf32>
    %10 = vector.shape_cast %9 : vector<8xf32> to vector<8x1xf32>
    %11 = math.sqrt %7 : vector<8x1xf32>
    %12 = math.sqrt %10 : vector<8x1xf32>
    %13 = arith.mulf %11, %12 : vector<8x1xf32>
    %cst_5 = arith.constant 9.99999993E-9 : f32
    %14 = vector.broadcast %cst_5 : f32 to vector<8x1xf32>
    %15 = arith.maximumf %13, %14 : vector<8x1xf32>
    %16 = arith.divf %4, %15 : vector<8x1xf32>
    %c0_6 = arith.constant 0 : index
    %c0_7 = arith.constant 0 : index
    %17 = vector.load %arg3[%c0_6, %c0_7] : memref<8x1xf32, #tpu.memory_space<vmem>>, vector<8x1xf32>
    tpu.vector_store %arg3[%c0_6, %c0_7], %16 {strides = array<i32>} : memref<8x1xf32, #tpu.memory_space<vmem>>, vector<8x1xf32>,
    return
  }
  func.func @transform_0(%arg0: i32) -> (i32, i32) {
    %c0_i32 = arith.constant 0 : i32
    %c0_i32_0 = arith.constant 0 : i32
    return %arg0, %c0_i32 : i32, i32
  }
  func.func @transform_1(%arg0: i32) -> (i32, i32) {
    %c0_i32 = arith.constant 0 : i32
    %c0_i32_0 = arith.constant 0 : i32
    return %arg0, %c0_i32 : i32, i32
  }
  func.func @transform_2(%arg0: i32) -> (i32, i32) {
    %c0_i32 = arith.constant 0 : i32
    %c0_i32_0 = arith.constant 0 : i32
    return %arg0, %c0_i32 : i32, i32
  }
}

</mosaic_0001>

<llo_original>
// kernel: tpu_custom_call.1
$region0: #{tpu_custom_call.1}
  #allocation0 [shape = 'u32[]', space=smem, size = 0x4, offset = 0x4, fixed_abs, tag = 'smem constant byte address 0x4 - core index']
  #allocation1 [shape = 'u32[144,128]{1,0:T(1,128)}', space=vmem, size = 0x12000, scoped, tag = 'internal scratch']
  %s0 = inlined_call_operand.hbm [shape: f32[8,256], index: 0, kind: input, shape index: {}]
  %s1 = inlined_call_operand.hbm [shape: f32[8,256], index: 1, kind: input, shape index: {}]
  %s2 = inlined_call_operand.vmem [shape: f32[8,1], index: 2, kind: output, shape index: {}]
  %s3 = sld [smem:[#allocation0]]
  $region26: #{tpu_custom_call.1} parent=0
    _
  %s5 = ssub.s32 1, %s3
  %s6 = scalar_select 0, %s5, %s3
  $region1: #{tpu_custom_call.1} parent=0
    #allocation2 [shape = 'u8[8192]{0}', space=vmem, size = 0x2000, scoped, tag = 'input window, operand 0, single buffered']
    #allocation3 [shape = 's32[1]{0}', space=sflag, size = 0x4, scoped, tag = 'scoped memory for tpu_custom_call.1']
    #allocation4 [shape = 'u8[8192]{0}', space=vmem, size = 0x2000, scoped, tag = 'input window, operand 1, single buffered']
    #allocation5 [shape = 's32[1]{0}', space=sflag, size = 0x4, scoped, tag = 'scoped memory for tpu_custom_call.1']
    %7 = vsyncpa [#allocation3], 0
    %8 = vsyncpa [#allocation5], 0
    // Predicated region
    $region2: #{tpu_custom_call.1} parent=1 // pred_check
      _
    $region3: #{tpu_custom_call.1} parent=1 // pred_check_branch
      %10 = sbr.rel (0) target = $region5
    $region4: #{tpu_custom_call.1} parent=1 // pred_region
      %s12 = ssub.s32 256, 256
      %13 = vsyncadd [#allocation3], %s12
      %s15 = sshll.u32 [#allocation2], 4
      %s16 = int_to_ptr.vmem [resolvable:$true] %s15
      %18 = dma.hbm_to_vmem [thread:$0]  %s0, 256, %s16, [#allocation3]
    $region5: #{tpu_custom_call.1} parent=1 // pred_fallthru
      _
    // Predicated region
    $region6: #{tpu_custom_call.1} parent=1 // pred_check
      _
    $region7: #{tpu_custom_call.1} parent=1 // pred_check_branch
      %20 = sbr.rel (0) target = $region9
    $region8: #{tpu_custom_call.1} parent=1 // pred_region
      %s22 = ssub.s32 256, 256
      %23 = vsyncadd [#allocation5], %s22
      %s25 = sshll.u32 [#allocation4], 4
      %s26 = int_to_ptr.vmem [resolvable:$true] %s25
      %28 = dma.hbm_to_vmem [thread:$0]  %s1, 256, %s26, [#allocation5]
    $region9: #{tpu_custom_call.1} parent=1 // pred_fallthru
      _
    // Predicated region
    $region10: #{tpu_custom_call.1} parent=1 // pred_check
      _
    $region11: #{tpu_custom_call.1} parent=1 // pred_check_branch
      %30 = sbr.rel (0) target = $region13
    $region12: #{tpu_custom_call.1} parent=1 // pred_region
      %31 = dma.done [#allocation3], 256
    $region13: #{tpu_custom_call.1} parent=1 // pred_fallthru
      _
    // Predicated region
    $region14: #{tpu_custom_call.1} parent=1 // pred_check
      _
    $region15: #{tpu_custom_call.1} parent=1 // pred_check_branch
      %33 = sbr.rel (0) target = $region17
    $region16: #{tpu_custom_call.1} parent=1 // pred_region
      %34 = dma.done [#allocation5], 256
    $region17: #{tpu_custom_call.1} parent=1 // pred_fallthru
      _
    %v35 = vld [vmem:[#allocation2] sm:$0xff]
    %v36 = vld [vmem:[#allocation2 + $0x8] sm:$0xff]
    %v37 = vld [vmem:[#allocation4] sm:$0xff]
    %v38 = vld [vmem:[#allocation4 + $0x8] sm:$0xff]
    %v39 = vmul.f32 %v37, %v35
    %v40 = vmul.f32 %v38, %v36
    %v41 = vadd.f32 %v39, %v40
    %42 = vadd.xlane.f32.xlu0 %v41
    %v43 = vpop.xlane.xlu0 %42
    %v44 = vmul.f32 %v35, %v35
    %v45 = vmul.f32 %v36, %v36
    %v46 = vadd.f32 %v44, %v45
    %47 = vadd.xlane.f32.xlu0 %v46
    %v48 = vpop.xlane.xlu0 %47
    %v49 = vmul.f32 %v37, %v37
    %v50 = vmul.f32 %v38, %v38
    %v51 = vadd.f32 %v49, %v50
    %52 = vadd.xlane.f32.xlu0 %v51
    %v53 = vpop.xlane.xlu0 %52
    %v54 = vrsqrt.pop %v48
    %v55 = vmul.f32 %v48, %v54
    %vm56 = vcmp.eq.f32.partialorder %v48, inf
    %v57 = vsel %vm56, %v48, %v55
    %vm58 = vcmp.eq.f32.partialorder %v48, 0.0
    %v59 = vand.u32 %v48, 2147483648
    %v60 = vsel %vm58, %v59, %v57
    %v61 = vrsqrt.pop %v53
    %v62 = vmul.f32 %v53, %v61
    %vm63 = vcmp.eq.f32.partialorder %v53, inf
    %v64 = vsel %vm63, %v53, %v62
    %vm65 = vcmp.eq.f32.partialorder %v53, 0.0
    %v66 = vand.u32 %v53, 2147483648
    %v67 = vsel %vm65, %v66, %v64
    %v68 = vmul.f32 %v60, %v67
    %v69 = vmax.f32 %v68, 1e-08
    %v70 = vrcp.pop %v69
    %v71 = vmul.f32 %v43, %v70
    %vm72 = vcmask 7168
    %73 = vst.msk [vmem:[%s2] sm:$0xff] %vm72, %v71
    // Predicated region
    $region18: #{tpu_custom_call.1} parent=1 // pred_check
      _
    $region19: #{tpu_custom_call.1} parent=1 // pred_check_branch
      %75 = sbr.rel (0) target = $region21
    $region20: #{tpu_custom_call.1} parent=1 // pred_region
      _
    $region21: #{tpu_custom_call.1} parent=1 // pred_fallthru
      _
    // Predicated region
    $region22: #{tpu_custom_call.1} parent=1 // pred_check
      _
    $region23: #{tpu_custom_call.1} parent=1 // pred_check_branch
      %77 = sbr.rel (0) target = $region25
    $region24: #{tpu_custom_call.1} parent=1 // pred_region
      _
    $region25: #{tpu_custom_call.1} parent=1 // pred_fallthru
      _
    %78 = vsyncpa [#allocation3], 1
    %79 = vsyncpa [#allocation5], 1

</llo_original>
